<compile_context>
chip_gen: v6e
topology: v6e:2x2x1
jax: 0.10.0
libtpu: 0.0.40
codegen_flags: <defaults>
</compile_context>

<pallas_src>
import jax
import jax.numpy as jnp
from jax import lax
from jax.experimental import pallas as pl
from jax.experimental.pallas import tpu as pltpu


def classifier_kernel(x_ref, w1_ref, b1_ref, w2_ref, b2_ref, ot_ref):
    # Layer 1 (MXU): contract the shared in_dim axis directly on the natural
    # (tile_b, in_dim) x tile (NT matmul) -> (hidden, tile_b), lane-dense.
    z = lax.dot_general(
        w1_ref[...], x_ref[...],
        dimension_numbers=(((1,), (1,)), ((), ())),
        preferred_element_type=jnp.float32)
    z = z + b1_ref[...]                           # (hidden, tile_b) + (hidden, 1)
    # sigmoid(z) = 0.5 * tanh(z / 2) + 0.5  -> EUP tanh, no VALU divide.
    h = 0.5 * jnp.tanh(0.5 * z) + 0.5

    # Layer 2 (MXU): (out, hidden) @ (hidden, tile_b) -> (out, tile_b).
    logits = jnp.dot(w2_ref[...], h, preferred_element_type=jnp.float32)
    logits = logits + b2_ref[...]                 # + (out, 1)

    # Softmax over the class axis (axis 0 here == dim=1 of the (B, out) layout).
    m = jnp.max(logits, axis=0, keepdims=True)    # (1, tile_b) sublane reduce
    e = jnp.exp(logits - m)
    denom = jnp.sum(e, axis=0, keepdims=True)     # (1, tile_b)
    # Exact divide: hidden under HBM slack; probabilities sum exactly to 1.
    ot_ref[...] = (e / denom).astype(ot_ref.dtype)


def _is_v7x():
    # Only v7x has 2 TensorCores per chip; on v5e/v6e splitting the grid just
    # doubles per-step overhead.
    try:
        return "v7" in jax.devices()[0].device_kind.lower()
    except Exception:
        return False


def classifier_forward(x, w1, b1, w2, b2, *, tile_b=16384):
    """Forward pass.

    x:  (B, in_dim)   activations (PyTorch layout)
    w1: (hidden, in)  b1: (hidden,)   -- PyTorch nn.Linear layout (out, in)
    w2: (out, hidden) b2: (out,)
    """
    B, in_dim = x.shape
    hidden_dim = w1.shape[0]
    out_dim = w2.shape[0]
    LANES = 128

    if B < LANES:
        # Single partial tile: block dims equal the array dims, so the (8,128)
        # BlockSpec divisibility rule is satisfied even for tiny batches.
        tile_b = B
    else:
        tile_b = max(LANES, (tile_b // LANES) * LANES)
        # VMEM budget per batch column (bytes), counting double buffers plus
        # Mosaic internal scratch for the z/h/logits/e intermediates.  Budget
        # against v7x's 32 MiB scoped VMEM with headroom (v5e/v6e have more).
        bytes_per_col = 4 * (2 * in_dim        # x double buffer
                             + 2 * out_dim     # output double buffer
                             + 2 * hidden_dim  # z, h intermediates
                             + 2 * out_dim)    # logits, e intermediates
        vmem_budget = 24 * 1024 * 1024
        max_tile = max(LANES, (vmem_budget // bytes_per_col // LANES) * LANES)
        tile_b = min(tile_b, max_tile)
        # Never use a block larger than the (lane-aligned) batch.
        tile_b = min(tile_b, (B // LANES) * LANES)
        # v7x only: keep >= 2 grid steps so the "parallel" batch axis shards
        # across both TensorCores.
        if _is_v7x() and pl.cdiv(B, tile_b) < 2 and B >= 2 * LANES:
            tile_b = max(LANES, ((tile_b // 2) // LANES) * LANES)

    grid = (pl.cdiv(B, tile_b),)

    b1c = b1.reshape(hidden_dim, 1)   # column biases broadcast over lanes
    b2c = b2.reshape(out_dim, 1)

    out_t = pl.pallas_call(
        classifier_kernel,
        out_shape=jax.ShapeDtypeStruct((out_dim, B), jnp.float32),
        grid_spec=pltpu.PrefetchScalarGridSpec(
            num_scalar_prefetch=0,
            grid=grid,
            in_specs=[
                # x in natural layout: one contiguous DMA burst per tile.
                pl.BlockSpec((tile_b, in_dim), lambda i: (i, 0)),
                # Constant index_maps: ~1.2 KiB of weights stay resident in
                # VMEM; Pallas skips re-DMA when the block index is unchanged.
                pl.BlockSpec((hidden_dim, in_dim), lambda i: (0, 0)),   # W1
                pl.BlockSpec((hidden_dim, 1), lambda i: (0, 0)),        # b1
                pl.BlockSpec((out_dim, hidden_dim), lambda i: (0, 0)),  # W2
                pl.BlockSpec((out_dim, 1), lambda i: (0, 0)),           # b2
            ],
            out_specs=pl.BlockSpec((out_dim, tile_b), lambda i: (0, i)),
        ),
        compiler_params=pltpu.CompilerParams(
            dimension_semantics=("parallel",),
            vmem_limit_bytes=32 * 1024 * 1024,
        ),
    )(x, w1, b1c, w2, b2c)

    # TODO(synk): if the consumer accepts (out_dim, B), return out_t directly
    # and skip this extra (small) HBM pass over the output.
    return out_t.T                                 # back to (B, out_dim)


if __name__ == "__main__":
    # Module config (hidden_dim = 8 as in the reference script).
    in_dim, hdim, out_dim = 32, 8, 4
    batch = 16

    key = jax.random.PRNGKey(0)
    kx, kw1, kb1, kw2, kb2 = jax.random.split(key, 5)

    x = jax.random.normal(kx, (batch, in_dim), dtype=jnp.float32)
    # PyTorch nn.Linear parameter layout: W is (out_features, in_features).
    w1 = jax.random.normal(kw1, (hdim, in_dim), dtype=jnp.float32) * 0.1
    b1 = jax.random.normal(kb1, (hdim,), dtype=jnp.float32) * 0.1
    w2 = jax.random.normal(kw2, (out_dim, hdim), dtype=jnp.float32) * 0.1
    b2 = jax.random.normal(kb2, (out_dim,), dtype=jnp.float32) * 0.1

    out = classifier_forward(x, w1, b1, w2, b2)
    jax.block_until_ready(out)

    # Pure-JAX reference with PyTorch semantics (x @ W^T + b).
    h_ref = jax.nn.sigmoid(x @ w1.T + b1)
    ref = jax.nn.softmax(h_ref @ w2.T + b2, axis=1)
    assert out.shape == (batch, out_dim)
    # Exact softmax divide now -> tight tolerance.
    assert jnp.allclose(out, ref, atol=1e-4, rtol=1e-4), "mismatch vs reference"

    print("KERNEL_OK")
</pallas_src>

<mosaic_0001>
module attributes {stable_mosaic.version = 11 : i64} {
  func.func @classifier_kernel(%arg0: i32, %arg1: memref<16x32xf32, #tpu.memory_space<vmem>>, %arg2: memref<8x32xf32, #tpu.memory_space<vmem>>, %arg3: memref<8x1xf32, #tpu.memory_space<vmem>>, %arg4: memref<4x8xf32, #tpu.memory_space<vmem>>, %arg5: memref<4x1xf32, #tpu.memory_space<vmem>>, %arg6: memref<4x16xf32, #tpu.memory_space<vmem>>) attributes {dimension_semantics = [#tpu.dimension_semantics<parallel>], iteration_bounds = array<i64: 1>, scalar_prefetch = 0 : i64, scratch_operands = 0 : i64, tpu.core_type = #tpu.core_type<tc>, window_params = [{transform_indices = @transform_0, window_bounds = array<i64: 16, 32>}, {pipeline_mode = #tpu.pipeline_mode<synchronous>, transform_indices = @transform_1, window_bounds = array<i64: 8, 32>}, {pipeline_mode = #tpu.pipeline_mode<synchronous>, transform_indices = @transform_2, window_bounds = array<i64: 8, 1>}, {pipeline_mode = #tpu.pipeline_mode<synchronous>, transform_indices = @transform_3, window_bounds = array<i64: 4, 8>}, {pipeline_mode = #tpu.pipeline_mode<synchronous>, transform_indices = @transform_4, window_bounds = array<i64: 4, 1>}, {transform_indices = @transform_5, window_bounds = array<i64: 4, 16>}]} {
    %c0 = arith.constant 0 : index
    %c0_0 = arith.constant 0 : index
    %0 = vector.load %arg2[%c0, %c0_0] : memref<8x32xf32, #tpu.memory_space<vmem>>, vector<8x32xf32>
    %c0_1 = arith.constant 0 : index
    %c0_2 = arith.constant 0 : index
    %1 = vector.load %arg1[%c0_1, %c0_2] : memref<16x32xf32, #tpu.memory_space<vmem>>, vector<16x32xf32>
    %cst = arith.constant dense<0.000000e+00> : vector<8x16xf32>
    %2 = tpu.matmul %0, %1, %cst {dimension_numbers = #tpu.dot_dimension_numbers<[1], [1], [0], [0], [0, 0, 1, 0], [], []>} : vector<8x32xf32>, vector<16x32xf32>, vector<8x16xf32> -> vector<8x16xf32>
    %c0_3 = arith.constant 0 : index
    %c0_4 = arith.constant 0 : index
    %3 = vector.load %arg3[%c0_3, %c0_4] : memref<8x1xf32, #tpu.memory_space<vmem>>, vector<8x1xf32>
    %4 = vector.broadcast %3 : vector<8x1xf32> to vector<8x16xf32>
    %5 = arith.addf %2, %4 : vector<8x16xf32>
    %cst_5 = arith.constant 5.000000e-01 : f32
    %6 = vector.broadcast %cst_5 : f32 to vector<8x16xf32>
    %7 = arith.mulf %6, %5 : vector<8x16xf32>
    %8 = math.tanh %7 : vector<8x16xf32>
    %cst_6 = arith.constant 5.000000e-01 : f32
    %9 = vector.broadcast %cst_6 : f32 to vector<8x16xf32>
    %10 = arith.mulf %9, %8 : vector<8x16xf32>
    %cst_7 = arith.constant 5.000000e-01 : f32
    %11 = vector.broadcast %cst_7 : f32 to vector<8x16xf32>
    %12 = arith.addf %10, %11 : vector<8x16xf32>
    %c0_8 = arith.constant 0 : index
    %c0_9 = arith.constant 0 : index
    %13 = vector.load %arg4[%c0_8, %c0_9] : memref<4x8xf32, #tpu.memory_space<vmem>>, vector<4x8xf32>
    %cst_10 = arith.constant dense<0.000000e+00> : vector<4x16xf32>
    %14 = tpu.matmul %13, %12, %cst_10 {dimension_numbers = #tpu.dot_dimension_numbers<[1], [0], [0], [1], [0, 0, 1, 1], [], []>} : vector<4x8xf32>, vector<8x16xf32>, vector<4x16xf32> -> vector<4x16xf32>
    %c0_11 = arith.constant 0 : index
    %c0_12 = arith.constant 0 : index
    %15 = vector.load %arg5[%c0_11, %c0_12] : memref<4x1xf32, #tpu.memory_space<vmem>>, vector<4x1xf32>
    %16 = vector.broadcast %15 : vector<4x1xf32> to vector<4x16xf32>
    %17 = arith.addf %14, %16 : vector<4x16xf32>
    %cst_13 = arith.constant dense<0xFF800000> : vector<16xf32>
    %18 = vector.multi_reduction <maximumf>, %17, %cst_13 [0] : vector<4x16xf32> to vector<16xf32>
    %19 = vector.shape_cast %18 : vector<16xf32> to vector<1x16xf32>
    %20 = vector.broadcast %19 : vector<1x16xf32> to vector<4x16xf32>
    %21 = arith.subf %17, %20 : vector<4x16xf32>
    %22 = math.exp %21 : vector<4x16xf32>
    %cst_14 = arith.constant dense<0.000000e+00> : vector<16xf32>
    %23 = vector.multi_reduction <add>, %22, %cst_14 [0] : vector<4x16xf32> to vector<16xf32>
    %24 = vector.shape_cast %23 : vector<16xf32> to vector<1x16xf32>
    %25 = vector.broadcast %24 : vector<1x16xf32> to vector<4x16xf32>
    %26 = arith.divf %22, %25 : vector<4x16xf32>
    %c0_15 = arith.constant 0 : index
    %c0_16 = arith.constant 0 : index
    %27 = vector.load %arg6[%c0_15, %c0_16] : memref<4x16xf32, #tpu.memory_space<vmem>>, vector<4x16xf32>
    tpu.vector_store %arg6[%c0_15, %c0_16], %26 {strides = array<i32>} : memref<4x16xf32, #tpu.memory_space<vmem>>, vector<4x16xf32>,
    return
  }
  func.func @transform_0(%arg0: i32) -> (i32, i32) {
    %c0_i32 = arith.constant 0 : i32
    %c0_i32_0 = arith.constant 0 : i32
    return %arg0, %c0_i32 : i32, i32
  }
  func.func @transform_1(%arg0: i32) -> (i32, i32) {
    %c0_i32 = arith.constant 0 : i32
    %c0_i32_0 = arith.constant 0 : i32
    %c0_i32_1 = arith.constant 0 : i32
    return %c0_i32, %c0_i32_0 : i32, i32
  }
  func.func @transform_2(%arg0: i32) -> (i32, i32) {
    %c0_i32 = arith.constant 0 : i32
    %c0_i32_0 = arith.constant 0 : i32
    %c0_i32_1 = arith.constant 0 : i32
    return %c0_i32, %c0_i32_0 : i32, i32
  }
  func.func @transform_3(%arg0: i32) -> (i32, i32) {
    %c0_i32 = arith.constant 0 : i32
    %c0_i32_0 = arith.constant 0 : i32
    %c0_i32_1 = arith.constant 0 : i32
    return %c0_i32, %c0_i32_0 : i32, i32
  }
  func.func @transform_4(%arg0: i32) -> (i32, i32) {
    %c0_i32 = arith.constant 0 : i32
    %c0_i32_0 = arith.constant 0 : i32
    %c0_i32_1 = arith.constant 0 : i32
    return %c0_i32, %c0_i32_0 : i32, i32
  }
  func.func @transform_5(%arg0: i32) -> (i32, i32) {
    %c0_i32 = arith.constant 0 : i32
    %c0_i32_0 = arith.constant 0 : i32
    return %c0_i32, %arg0 : i32, i32
  }
}

</mosaic_0001>

<llo_original>
// kernel: tpu_custom_call.1
$region0: #{tpu_custom_call.1}
  #allocation0 [shape = 'u32[]', space=smem, size = 0x4, offset = 0x4, fixed_abs, tag = 'smem constant byte address 0x4 - core index']
  #allocation1 [shape = 'u32[144,128]{1,0:T(1,128)}', space=vmem, size = 0x12000, scoped, tag = 'internal scratch']
  %s0 = inlined_call_operand.hbm [shape: f32[16,32], index: 0, kind: input, shape index: {}]
  %s1 = inlined_call_operand.vmem [shape: f32[8,32], index: 1, kind: input, shape index: {}]
  %s2 = inlined_call_operand.vmem [shape: f32[8,1], index: 2, kind: input, shape index: {}]
  %s3 = inlined_call_operand.vmem [shape: f32[4,8], index: 3, kind: input, shape index: {}]
  %s4 = inlined_call_operand.vmem [shape: f32[4,1], index: 4, kind: input, shape index: {}]
  %s5 = inlined_call_operand.hbm [shape: f32[4,16], index: 5, kind: output, shape index: {}]
  %s6 = sld [smem:[#allocation0]]
  $region34: #{tpu_custom_call.1} parent=0
    _
  %s8 = ssub.s32 1, %s6
  %s9 = scalar_select 0, %s8, %s6
  $region1: #{tpu_custom_call.1} parent=0
    #allocation2 [shape = 'u8[8192]{0}', space=vmem, size = 0x2000, scoped, tag = 'input window, operand 0, single buffered']
    #allocation3 [shape = 's32[1]{0}', space=sflag, size = 0x4, scoped, tag = 'scoped memory for tpu_custom_call.1']
    #allocation4 [shape = 's32[1]{0}', space=sflag, size = 0x4, scoped, tag = 'scoped memory for tpu_custom_call.1']
    #allocation5 [shape = 'u8[2048]{0}', space=vmem, size = 0x800, scoped, tag = 'output window, operand 0, single buffered']
    %10 = vsyncpa [#allocation3], 0
    %11 = vsyncpa [#allocation4], 0
    // Predicated region
    $region2: #{tpu_custom_call.1} parent=1 // pred_check
      _
    $region3: #{tpu_custom_call.1} parent=1 // pred_check_branch
      %13 = sbr.rel (0) target = $region5
    $region4: #{tpu_custom_call.1} parent=1 // pred_region
      %s15 = ssub.s32 256, 256
      %16 = vsyncadd [#allocation3], %s15
      %s17 = sshll.u32 [#allocation2], 4
      %s18 = int_to_ptr.vmem [resolvable:$true] %s17
      %23 = dma.hbm_to_vmem [thread:$0]  %s0, 256, %s18, [#allocation3], 128, 128, 8
    $region5: #{tpu_custom_call.1} parent=1 // pred_fallthru
      _
    // Predicated region
    $region6: #{tpu_custom_call.1} parent=1 // pred_check
      _
    $region7: #{tpu_custom_call.1} parent=1 // pred_check_branch
      %25 = sbr.rel (0) target = $region9
    $region8: #{tpu_custom_call.1} parent=1 // pred_region
      _
    $region9: #{tpu_custom_call.1} parent=1 // pred_fallthru
      _
    // Predicated region
    $region10: #{tpu_custom_call.1} parent=1 // pred_check
      _
    $region11: #{tpu_custom_call.1} parent=1 // pred_check_branch
      %27 = sbr.rel (0) target = $region13
    $region12: #{tpu_custom_call.1} parent=1 // pred_region
      _
    $region13: #{tpu_custom_call.1} parent=1 // pred_fallthru
      _
    // Predicated region
    $region14: #{tpu_custom_call.1} parent=1 // pred_check
      _
    $region15: #{tpu_custom_call.1} parent=1 // pred_check_branch
      %29 = sbr.rel (0) target = $region17
    $region16: #{tpu_custom_call.1} parent=1 // pred_region
      _
    $region17: #{tpu_custom_call.1} parent=1 // pred_fallthru
      _
    // Predicated region
    $region18: #{tpu_custom_call.1} parent=1 // pred_check
      _
    $region19: #{tpu_custom_call.1} parent=1 // pred_check_branch
      %31 = sbr.rel (0) target = $region21
    $region20: #{tpu_custom_call.1} parent=1 // pred_region
      _
    $region21: #{tpu_custom_call.1} parent=1 // pred_fallthru
      _
    // Predicated region
    $region22: #{tpu_custom_call.1} parent=1 // pred_check
      _
    $region23: #{tpu_custom_call.1} parent=1 // pred_check_branch
      %33 = sbr.rel (0) target = $region25
    $region24: #{tpu_custom_call.1} parent=1 // pred_region
      %34 = dma.done [#allocation3], 256
    $region25: #{tpu_custom_call.1} parent=1 // pred_fallthru
      _
    %v35 = vld [vmem:[%s1] sm:$0xff]
    %v36 = vld [vmem:[#allocation2] sm:$0xff]
    %v37 = vld [vmem:[#allocation2 + $0x8] sm:$0xff]
    %v38 = vld [vmem:[%s2] sm:$0xff]
    %40 = vset.pattern.permute.xlu0 0
    %41 = vperm.xlu0 %40, %v38
    %v42 = vpop.permute.xlu0 %41
    %vm44 = vcmask 261120
    %v46 = vsel %vm44, %v35, 0
    %v49 = vsel %vm44, %v36, 0
    %v52 = vsel %vm44, %v37, 0
    %54 = vmatprep.subr.mxu0 0.0
    %55 = vmatpush1.xpose.msra.mxu0 0.0
    %56 = vmatprep.subr.mxu0 0.0
    %57 = vmatpush1.xpose.msra.mxu0 0.0
    %58 = vmatprep.subr.mxu0 0.0
    %59 = vmatpush1.xpose.msra.mxu0 0.0
    %60 = vmatprep.subr.mxu0 0.0
    %61 = vmatpush1.xpose.msra.mxu0 0.0
    %62 = vmatprep.subr.mxu0 0.0
    %63 = vmatpush1.xpose.msra.mxu0 0.0
    %64 = vmatprep.subr.mxu0 0.0
    %65 = vmatpush1.xpose.msra.mxu0 0.0
    %66 = vmatprep.subr.mxu0 0.0
    %67 = vmatpush1.xpose.msra.mxu0 0.0
    %68 = vmatprep.subr.mxu0 0.0
    %69 = vmatpush1.xpose.msra.mxu0 0.0
    %70 = vmatprep.subr.mxu0 0.0
    %71 = vmatpush1.xpose.msra.mxu0 0.0
    %72 = vmatprep.subr.mxu0 0.0
    %73 = vmatpush1.xpose.msra.mxu0 0.0
    %74 = vmatprep.subr.mxu0 0.0
    %75 = vmatpush1.xpose.msra.mxu0 0.0
    %76 = vmatprep.subr.mxu0 0.0
    %77 = vmatpush1.xpose.msra.mxu0 0.0
    %78 = vmatprep.subr.mxu0 0.0
    %79 = vmatpush1.xpose.msra.mxu0 0.0
    %80 = vmatprep.subr.mxu0 0.0
    %81 = vmatpush1.xpose.msra.mxu0 0.0
    %82 = vmatprep.subr.mxu0 0.0
    %83 = vmatpush1.xpose.msra.mxu0 %v52
    %84 = vmatprep.subr.mxu0 0.0
    %85 = vmatpush1.xpose.msra.mxu0 %v49
    %86 = vmatprep.subr.mxu0 0.0
    %87 = vmatpush2.xpose.msra.mxu0 0.0
    %88 = vmatprep.subr.mxu0 0.0
    %89 = vmatpush2.xpose.msra.mxu0 0.0
    %90 = vmatprep.subr.mxu0 0.0
    %91 = vmatpush2.xpose.msra.mxu0 0.0
    %92 = vmatprep.subr.mxu0 0.0
    %93 = vmatpush2.xpose.msra.mxu0 0.0
    %94 = vmatprep.subr.mxu0 0.0
    %95 = vmatpush2.xpose.msra.mxu0 0.0
    %96 = vmatprep.subr.mxu0 0.0
    %97 = vmatpush2.xpose.msra.mxu0 0.0
    %98 = vmatprep.subr.mxu0 0.0
    %99 = vmatpush2.xpose.msra.mxu0 0.0
    %100 = vmatprep.subr.mxu0 0.0
    %101 = vmatpush2.xpose.msra.mxu0 0.0
    %102 = vmatprep.subr.mxu0 0.0
    %103 = vmatpush2.xpose.msra.mxu0 0.0
    %104 = vmatprep.subr.mxu0 0.0
    %105 = vmatpush2.xpose.msra.mxu0 0.0
    %106 = vmatprep.subr.mxu0 0.0
    %107 = vmatpush2.xpose.msra.mxu0 0.0
    %108 = vmatprep.subr.mxu0 0.0
    %109 = vmatpush2.xpose.msra.mxu0 0.0
    %110 = vmatprep.subr.mxu0 0.0
    %111 = vmatpush2.xpose.msra.mxu0 0.0
    %112 = vmatprep.subr.mxu0 0.0
    %113 = vmatpush2.xpose.msra.mxu0 0.0
    %114 = vmatprep.subr.mxu0 0.0
    %115 = vmatpush2.xpose.msra.mxu0 0.0
    %116 = vmatprep.subr.mxu0 0.0
    %117 = vmatpush2.xpose.msra.mxu0 0.0
    %118 = vmatprep.mubr.f32.mxu0 0.0
    %119 = vmatmul.mubr.f32.gmra.mxu0 %v46
    %v120 = vpop.f32.mrf.mxu0
    %v121 = vadd.f32 %v42, %v120
    %v122 = vpop.f32.mrf.mxu0
    %123 = vdwg.mxu0
    %v124 = vmul.f32 %v121, 0.5
    %v125 = vtanh.pop %v124
    %v126 = vmul.f32 %v125, 0.5
    %v127 = vadd.f32 %v126, 0.5
    %v128 = vld [vmem:[%s3] sm:$0xf]
    %v129 = vld [vmem:[%s4] sm:$0xf]
    %131 = vset.pattern.permute.xlu0 0
    %132 = vperm.xlu0 %131, %v129
    %v133 = vpop.permute.xlu0 %132
    %vm135 = vcmask 64512
    %v137 = vsel %vm135, %v128, 0
    %139 = vmatprep.subr.mxu0 0.0
    %140 = vmatpush1.msra.mxu0 0.0
    %141 = vmatprep.subr.mxu0 0.0
    %142 = vmatpush1.msra.mxu0 0.0
    %143 = vmatprep.subr.mxu0 0.0
    %144 = vmatpush1.msra.mxu0 0.0
    %145 = vmatprep.subr.mxu0 0.0
    %146 = vmatpush1.msra.mxu0 0.0
    %147 = vmatprep.subr.mxu0 0.0
    %148 = vmatpush1.msra.mxu0 0.0
    %149 = vmatprep.subr.mxu0 0.0
    %150 = vmatpush1.msra.mxu0 0.0
    %151 = vmatprep.subr.mxu0 0.0
    %152 = vmatpush1.msra.mxu0 0.0
    %153 = vmatprep.subr.mxu0 0.0
    %154 = vmatpush1.msra.mxu0 0.0
    %155 = vmatprep.subr.mxu0 0.0
    %156 = vmatpush1.msra.mxu0 0.0
    %157 = vmatprep.subr.mxu0 0.0
    %158 = vmatpush1.msra.mxu0 0.0
    %159 = vmatprep.subr.mxu0 0.0
    %160 = vmatpush1.msra.mxu0 0.0
    %161 = vmatprep.subr.mxu0 0.0
    %162 = vmatpush1.msra.mxu0 0.0
    %163 = vmatprep.subr.mxu0 0.0
    %164 = vmatpush1.msra.mxu0 0.0
    %165 = vmatprep.subr.mxu0 0.0
    %166 = vmatpush1.msra.mxu0 0.0
    %167 = vmatprep.subr.mxu0 0.0
    %168 = vmatpush1.msra.mxu0 0.0
    %169 = vmatprep.subr.mxu0 0.0
    %170 = vmatpush1.msra.mxu0 %v127
    %171 = vmatprep.subr.mxu0 0.0
    %172 = vmatpush2.msra.mxu0 0.0
    %173 = vmatprep.subr.mxu0 0.0
    %174 = vmatpush2.msra.mxu0 0.0
    %175 = vmatprep.subr.mxu0 0.0
    %176 = vmatpush2.msra.mxu0 0.0
    %177 = vmatprep.subr.mxu0 0.0
    %178 = vmatpush2.msra.mxu0 0.0
    %179 = vmatprep.subr.mxu0 0.0
    %180 = vmatpush2.msra.mxu0 0.0
    %181 = vmatprep.subr.mxu0 0.0
    %182 = vmatpush2.msra.mxu0 0.0
    %183 = vmatprep.subr.mxu0 0.0
    %184 = vmatpush2.msra.mxu0 0.0
    %185 = vmatprep.subr.mxu0 0.0
    %186 = vmatpush2.msra.mxu0 0.0
    %187 = vmatprep.subr.mxu0 0.0
    %188 = vmatpush2.msra.mxu0 0.0
    %189 = vmatprep.subr.mxu0 0.0
    %190 = vmatpush2.msra.mxu0 0.0
    %191 = vmatprep.subr.mxu0 0.0
    %192 = vmatpush2.msra.mxu0 0.0
    %193 = vmatprep.subr.mxu0 0.0
    %194 = vmatpush2.msra.mxu0 0.0
    %195 = vmatprep.subr.mxu0 0.0
    %196 = vmatpush2.msra.mxu0 0.0
    %197 = vmatprep.subr.mxu0 0.0
    %198 = vmatpush2.msra.mxu0 0.0
    %199 = vmatprep.subr.mxu0 0.0
    %200 = vmatpush2.msra.mxu0 0.0
    %201 = vmatprep.subr.mxu0 0.0
    %202 = vmatpush2.msra.mxu0 0.0
    %203 = vmatprep.mubr.f32.mxu0 0.0
    %204 = vmatmul.mubr.f32.gmra.mxu0 %v137
    %v205 = vpop.f32.mrf.mxu0
    %v206 = vadd.f32 %v133, %v205
    %v207 = vpop.f32.mrf.mxu0
    %208 = vdwg.mxu0
    %vm209 = vcmask 125952
    %v210 = vsel %vm209, %v206, -inf
    %v211 = vrot.slane %v210, 4
    %v212 = vmax.f32 %v210, %v211
    %v213 = vrot.slane %v212, 2
    %v214 = vmax.f32 %v212, %v213
    %v215 = vrot.slane %v214, 1
    %v216 = vmax.f32 %v214, %v215
    %v217 = vsub.f32 %v206, %v216
    %v218 = vmul.f32 %v217, 1.442695
    %v219 = vpow.pop %v218
    %v220 = vsel %vm209, %v219, 0.0
    %v221 = vrot.slane %v220, 4
    %v222 = vadd.f32 %v220, %v221
    %v223 = vrot.slane %v222, 2
    %v224 = vadd.f32 %v222, %v223
    %v225 = vrot.slane %v224, 1
    %v226 = vadd.f32 %v224, %v225
    %v227 = vrcp.pop %v226
    %v228 = vmul.f32 %v219, %v227
    %229 = vst.msk [vmem:[#allocation5] sm:$0xf] %vm209, %v228
    // Predicated region
    $region26: #{tpu_custom_call.1} parent=1 // pred_check
      _
    $region27: #{tpu_custom_call.1} parent=1 // pred_check_branch
      %231 = sbr.rel (0) target = $region29
    $region28: #{tpu_custom_call.1} parent=1 // pred_region
      %s233 = ssub.s32 64, 64
      %234 = vsyncadd [#allocation4], %s233
      %s236 = sshll.u32 [#allocation5], 4
      %s237 = int_to_ptr.vmem [resolvable:$true] %s236
      %239 = dma.vmem_to_hbm [thread:$0]  %s237, 64, %s5, [#allocation4]
    $region29: #{tpu_custom_call.1} parent=1 // pred_fallthru
      _
    // Predicated region
    $region30: #{tpu_custom_call.1} parent=1 // pred_check
      _
    $region31: #{tpu_custom_call.1} parent=1 // pred_check_branch
      %241 = sbr.rel (0) target = $region33
    $region32: #{tpu_custom_call.1} parent=1 // pred_region
      %242 = dma.done [#allocation4], 64
    $region33: #{tpu_custom_call.1} parent=1 // pred_fallthru
      _
    %243 = vsyncpa [#allocation3], 1
    %244 = vsyncpa [#allocation4], 1

</llo_original>
